<compile_context>
chip_gen: v6e
topology: v6e:2x2x1
jax: 0.10.0
libtpu: 0.0.40
codegen_flags: <defaults>
</compile_context>

<pallas_src>
import functools

import jax
import jax.numpy as jnp
from jax.experimental import pallas as pl
from jax.experimental.pallas import tpu as pltpu


def _dropout_kernel(seed_ref, x_ref, o_ref, *, p):
    tile_r, lanes = x_ref.shape

    # ---- counter-based RNG: unique 32-bit counter per element, mixed with seed.
    row = jax.lax.broadcasted_iota(jnp.int32, (tile_r, lanes), 0)
    col = jax.lax.broadcasted_iota(jnp.int32, (tile_r, lanes), 1)
    idx = (pl.program_id(0) * tile_r + row) * lanes + col          # global element index
    seed_u = seed_ref[0].astype(jnp.uint32) * jnp.uint32(0x9E3779B9)

    h = idx.astype(jnp.uint32) ^ seed_u
    # "lowbias32" integer finalizer (good avalanche on sequential counters).
    h = h ^ (h >> 16)
    h = h * jnp.uint32(0x7FEB352D)
    h = h ^ (h >> 15)
    h = h * jnp.uint32(0x846CA68B)
    h = h ^ (h >> 16)

    xf = x_ref[...].astype(jnp.float32)   # 32-bit compute path (v5e-safe)

    if p >= 1.0:
        # torch: binary = (rand > 1) == 0 everywhere, scale = 1 -> all zeros.
        o_ref[...] = jnp.zeros_like(xf).astype(o_ref.dtype)
    else:
        # Keep iff the top-31 uniform bits >= p * 2^31 (signed compare only).
        # p == 0 -> threshold 0 -> exact identity.
        thresh = jnp.int32(min(int(p * 2147483648.0), 2147483647))
        r = (h >> 1).astype(jnp.int32)                              # uniform in [0, 2^31)
        scale = jnp.float32(1.0 / (1.0 - p))
        o_ref[...] = jnp.where(r >= thresh, xf * scale,
                               jnp.float32(0.0)).astype(o_ref.dtype)


def dropout(x, p, seed, training=True):
    """Forward pass of the PyTorch Dropout module.

    training=False -> identity (matches the `if self.training:` guard).
    training=True  -> x * (rand_like(x) > p).float() * (1/(1-p) if p != 1 else 1)
    """
    if p < 0 or p > 1:
        raise ValueError("dropout ratio must be in [0, 1].")
    if not training:
        return x

    orig_shape = x.shape
    n = x.size

    # ---- lane-dense 2D slab; block as big as reasonable (amortize step overhead)
    LANES = 512 if n >= 512 * 8 else 128            # multiple of 128 (lane dim)
    rows = -(-n // LANES)
    TILE_R = min(1024, ((rows + 7) // 8) * 8)       # multiple of 8 (sublane dim)
    rows_pad = ((rows + TILE_R - 1) // TILE_R) * TILE_R
    n_pad = rows_pad * LANES

    flat = x.reshape(-1)
    if n_pad != n:
        flat = jnp.pad(flat, (0, n_pad - n))        # only when tiling is ragged
    x2d = flat.reshape(rows_pad, LANES)
    grid = rows_pad // TILE_R

    seed_arr = jnp.array([seed], dtype=jnp.int32)

    out2d = pl.pallas_call(
        functools.partial(_dropout_kernel, p=float(p)),
        out_shape=jax.ShapeDtypeStruct((rows_pad, LANES), x.dtype),
        grid_spec=pltpu.PrefetchScalarGridSpec(
            num_scalar_prefetch=1,
            grid=(grid,),
            in_specs=[pl.BlockSpec((TILE_R, LANES), lambda i, seed: (i, 0))],
            out_specs=pl.BlockSpec((TILE_R, LANES), lambda i, seed: (i, 0)),
        ),
        compiler_params=pltpu.CompilerParams(
            dimension_semantics=("parallel",)),
    )(seed_arr, x2d)

    out = out2d.reshape(-1)
    if n_pad != n:
        out = out[:n]
    return out.reshape(orig_shape)


if __name__ == "__main__":
    key = jax.random.PRNGKey(0)
    x = jax.random.normal(key, (2, 4, 16, 16), dtype=jnp.float32)

    p = 0.5
    y = jax.block_until_ready(dropout(x, p=p, seed=42, training=True))

    # Shape/dtype preserved; survivors scaled by exactly 1/(1-p), dropped == 0.
    assert y.shape == x.shape and y.dtype == x.dtype
    scaled = x * (1.0 / (1.0 - p))
    ok = jnp.logical_or(jnp.isclose(y, 0.0), jnp.isclose(y, scaled, atol=1e-5))
    assert bool(jnp.all(ok))
    keep_frac = float(jnp.mean((y != 0.0).astype(jnp.float32)))
    assert 0.35 < keep_frac < 0.65   # roughly p=0.5 keep rate

    # p = 0 in training mode is an exact identity.
    y0 = jax.block_until_ready(dropout(x, p=0.0, seed=7, training=True))
    assert bool(jnp.all(y0 == x))

    # Eval mode is identity.
    y_eval = jax.block_until_ready(dropout(x, p=p, seed=42, training=False))
    assert bool(jnp.all(y_eval == x))

    print("KERNEL_OK")
</pallas_src>

<mosaic_0001>
module attributes {stable_mosaic.version = 11 : i64} {
  func.func @_dropout_kernel(%arg0: i32, %arg1: memref<1xi32, #tpu.memory_space<smem>>, %arg2: memref<16x128xf32, #tpu.memory_space<vmem>>, %arg3: memref<16x128xf32, #tpu.memory_space<vmem>>) attributes {dimension_semantics = [#tpu.dimension_semantics<parallel>], iteration_bounds = array<i64: 1>, scalar_prefetch = 1 : i64, scratch_operands = 0 : i64, tpu.core_type = #tpu.core_type<tc>, window_params = [{transform_indices = @transform_0, window_bounds = array<i64: 16, 128>}, {transform_indices = @transform_1, window_bounds = array<i64: 16, 128>}]} {
    %0 = tpu.iota {dimensions = array<i32: 0>} : vector<16x128xi32>
    %1 = tpu.iota {dimensions = array<i32: 1>} : vector<16x128xi32>
    %c16_i32 = arith.constant 16 : i32
    %2 = arith.muli %arg0, %c16_i32 : i32
    %3 = vector.broadcast %2 : i32 to vector<16x128xi32>
    %4 = arith.addi %3, %0 : vector<16x128xi32>
    %c128_i32 = arith.constant 128 : i32
    %5 = vector.broadcast %c128_i32 : i32 to vector<16x128xi32>
    %6 = arith.muli %4, %5 : vector<16x128xi32>
    %7 = arith.addi %6, %1 : vector<16x128xi32>
    %c0 = arith.constant 0 : index
    %8 = memref.load %arg1[%c0] : memref<1xi32, #tpu.memory_space<smem>>
    %c-1640531527_i32 = arith.constant -1640531527 : i32
    %9 = arith.muli %8, %c-1640531527_i32 : i32
    %10 = vector.broadcast %9 : i32 to vector<16x128xi32>
    %11 = arith.xori %7, %10 : vector<16x128xi32>
    %c16_i32_0 = arith.constant 16 : i32
    %12 = vector.broadcast %c16_i32_0 : i32 to vector<16x128xi32>
    %13 = arith.shrui %11, %12 : vector<16x128xi32>
    %14 = arith.xori %11, %13 : vector<16x128xi32>
    %c2146121005_i32 = arith.constant 2146121005 : i32
    %15 = vector.broadcast %c2146121005_i32 : i32 to vector<16x128xi32>
    %16 = arith.muli %14, %15 : vector<16x128xi32>
    %c15_i32 = arith.constant 15 : i32
    %17 = vector.broadcast %c15_i32 : i32 to vector<16x128xi32>
    %18 = arith.shrui %16, %17 : vector<16x128xi32>
    %19 = arith.xori %16, %18 : vector<16x128xi32>
    %c-2073254261_i32 = arith.constant -2073254261 : i32
    %20 = vector.broadcast %c-2073254261_i32 : i32 to vector<16x128xi32>
    %21 = arith.muli %19, %20 : vector<16x128xi32>
    %c16_i32_1 = arith.constant 16 : i32
    %22 = vector.broadcast %c16_i32_1 : i32 to vector<16x128xi32>
    %23 = arith.shrui %21, %22 : vector<16x128xi32>
    %24 = arith.xori %21, %23 : vector<16x128xi32>
    %c0_2 = arith.constant 0 : index
    %c0_3 = arith.constant 0 : index
    %25 = vector.load %arg2[%c0_2, %c0_3] : memref<16x128xf32, #tpu.memory_space<vmem>>, vector<16x128xf32>
    %c1_i32 = arith.constant 1 : i32
    %26 = vector.broadcast %c1_i32 : i32 to vector<16x128xi32>
    %27 = arith.shrui %24, %26 : vector<16x128xi32>
    %c1073741824_i32 = arith.constant 1073741824 : i32
    %28 = vector.broadcast %c1073741824_i32 : i32 to vector<16x128xi32>
    %29 = arith.cmpi sge, %27, %28 : vector<16x128xi32>
    %cst = arith.constant 2.000000e+00 : f32
    %30 = vector.broadcast %cst : f32 to vector<16x128xf32>
    %31 = arith.mulf %25, %30 : vector<16x128xf32>
    %cst_4 = arith.constant 0.000000e+00 : f32
    %32 = vector.broadcast %cst_4 : f32 to vector<16x128xf32>
    %33 = arith.select %29, %31, %32 : vector<16x128xi1>, vector<16x128xf32>
    %c0_5 = arith.constant 0 : index
    %c0_6 = arith.constant 0 : index
    %34 = vector.load %arg3[%c0_5, %c0_6] : memref<16x128xf32, #tpu.memory_space<vmem>>, vector<16x128xf32>
    tpu.vector_store %arg3[%c0_5, %c0_6], %33 {strides = array<i32>} : memref<16x128xf32, #tpu.memory_space<vmem>>, vector<16x128xf32>,
    return
  }
  func.func @transform_0(%arg0: i32, %arg1: memref<1xi32, #tpu.memory_space<smem>>) -> (i32, i32) {
    %c0_i32 = arith.constant 0 : i32
    %c0_i32_0 = arith.constant 0 : i32
    return %arg0, %c0_i32 : i32, i32
  }
  func.func @transform_1(%arg0: i32, %arg1: memref<1xi32, #tpu.memory_space<smem>>) -> (i32, i32) {
    %c0_i32 = arith.constant 0 : i32
    %c0_i32_0 = arith.constant 0 : i32
    return %arg0, %c0_i32 : i32, i32
  }
}

</mosaic_0001>

<llo_original>
// kernel: tpu_custom_call.1
$region0: #{tpu_custom_call.1}
  #allocation0 [shape = 'u32[]', space=smem, size = 0x4, offset = 0x4, fixed_abs, tag = 'smem constant byte address 0x4 - core index']
  #allocation1 [shape = 'u32[144,128]{1,0:T(1,128)}', space=vmem, size = 0x12000, scoped, tag = 'internal scratch']
  #allocation2 [shape = 's32[1]{0}', space=sflag, size = 0x4, scoped, tag = 'scoped memory for tpu_custom_call.1']
  #allocation3 [shape = 's32[1]{0:T(128)S(6)}', space=smem, size = 0x200, scoped, tag = 'prefetched SMEM operand 0']
  %s0 = inlined_call_operand.<no memory space> [shape: s32[1], index: 0, kind: input, shape index: {}]
  %s1 = inlined_call_operand.hbm [shape: f32[16,128], index: 1, kind: input, shape index: {}]
  %s2 = inlined_call_operand.hbm [shape: f32[16,128], index: 2, kind: output, shape index: {}]
  %s3 = sld [smem:[#allocation0]]
  $region18: #{tpu_custom_call.1} parent=0
    _
  %s5 = ssub.s32 1, %s3
  %s6 = scalar_select 0, %s5, %s3
  %7 = sst [smem:[#allocation3]] %s0
  $region1: #{tpu_custom_call.1} parent=0
    #allocation4 [shape = 'u8[8192]{0}', space=vmem, size = 0x2000, scoped, tag = 'input window, operand 1, single buffered']
    #allocation5 [shape = 's32[1]{0}', space=sflag, size = 0x4, scoped, tag = 'scoped memory for tpu_custom_call.1']
    #allocation6 [shape = 's32[1]{0}', space=sflag, size = 0x4, scoped, tag = 'scoped memory for tpu_custom_call.1']
    #allocation7 [shape = 'u8[8192]{0}', space=vmem, size = 0x2000, scoped, tag = 'output window, operand 0, single buffered']
    %8 = vsyncpa [#allocation5], 0
    %9 = vsyncpa [#allocation6], 0
    // Predicated region
    $region2: #{tpu_custom_call.1} parent=1 // pred_check
      _
    $region3: #{tpu_custom_call.1} parent=1 // pred_check_branch
      %11 = sbr.rel (0) target = $region5
    $region4: #{tpu_custom_call.1} parent=1 // pred_region
      %s13 = ssub.s32 256, 256
      %14 = vsyncadd [#allocation5], %s13
      %s15 = sshll.u32 [#allocation4], 4
      %s16 = int_to_ptr.vmem [resolvable:$true] %s15
      %21 = dma.hbm_to_vmem [thread:$0]  %s1, 256, %s16, [#allocation5], 128, 128, 8
    $region5: #{tpu_custom_call.1} parent=1 // pred_fallthru
      _
    // Predicated region
    $region6: #{tpu_custom_call.1} parent=1 // pred_check
      _
    $region7: #{tpu_custom_call.1} parent=1 // pred_check_branch
      %23 = sbr.rel (0) target = $region9
    $region8: #{tpu_custom_call.1} parent=1 // pred_region
      %24 = dma.done [#allocation5], 256
    $region9: #{tpu_custom_call.1} parent=1 // pred_fallthru
      _
    %v25 = vlaneseq
    %v26 = vshrl.u32 %v25, 7
    %v27 = vadd.s32 %v26, 8
    %v28 = vlaneseq
    %v29 = vand.u32 %v28, 127
    %s30 = smul.u32 0, 16
    %v31 = vstv %s30
    %v32 = vadd.s32 %v31, %v26
    %v33 = vadd.s32 %v31, %v27
    %v34 = vmul.u32 %v32, 128
    %v35 = vmul.u32 %v33, 128
    %v36 = vadd.s32 %v34, %v29
    %v37 = vadd.s32 %v35, %v29
    %s38 = sld [smem:[#allocation3]]
    %s39 = smul.u32 %s38, 2654435769
    %v40 = vstv %s39
    %v41 = vxor.u32 %v36, %v40
    %v42 = vxor.u32 %v37, %v40
    %v43 = vshrl.u32 %v41, 16
    %v44 = vshrl.u32 %v42, 16
    %v45 = vxor.u32 %v41, %v43
    %v46 = vxor.u32 %v42, %v44
    %v47 = vmul.u32 %v45, 2146121005
    %v48 = vmul.u32 %v46, 2146121005
    %v49 = vshrl.u32 %v47, 15
    %v50 = vshrl.u32 %v48, 15
    %v51 = vxor.u32 %v47, %v49
    %v52 = vxor.u32 %v48, %v50
    %v53 = vmul.u32 %v51, 2221713035
    %v54 = vmul.u32 %v52, 2221713035
    %v55 = vshrl.u32 %v53, 16
    %v56 = vshrl.u32 %v54, 16
    %v57 = vxor.u32 %v53, %v55
    %v58 = vxor.u32 %v54, %v56
    %v59 = vld [vmem:[#allocation4] sm:$0xff]
    %v60 = vld [vmem:[#allocation4 + $0x8] sm:$0xff]
    %v61 = vshrl.u32 %v57, 1
    %v62 = vshrl.u32 %v58, 1
    %vm63 = vcmp.ge.s32.totalorder %v61, 1073741824
    %vm64 = vcmp.ge.s32.totalorder %v62, 1073741824
    %v65 = vmul.f32 %v59, 2.0
    %v66 = vmul.f32 %v60, 2.0
    %v67 = vsel %vm63, %v65, 0.0
    %v68 = vsel %vm64, %v66, 0.0
    %69 = vst [vmem:[#allocation7] sm:$0xff] %v67
    %70 = vst [vmem:[#allocation7 + $0x8] sm:$0xff] %v68
    // Predicated region
    $region10: #{tpu_custom_call.1} parent=1 // pred_check
      _
    $region11: #{tpu_custom_call.1} parent=1 // pred_check_branch
      %72 = sbr.rel (0) target = $region13
    $region12: #{tpu_custom_call.1} parent=1 // pred_region
      %s74 = ssub.s32 256, 256
      %75 = vsyncadd [#allocation6], %s74
      %s76 = sshll.u32 [#allocation7], 4
      %s77 = int_to_ptr.vmem [resolvable:$true] %s76
      %82 = dma.vmem_to_hbm [thread:$0]  %s77, 256, %s2, [#allocation6], 128, 128, 8
    $region13: #{tpu_custom_call.1} parent=1 // pred_fallthru
      _
    // Predicated region
    $region14: #{tpu_custom_call.1} parent=1 // pred_check
      _
    $region15: #{tpu_custom_call.1} parent=1 // pred_check_branch
      %84 = sbr.rel (0) target = $region17
    $region16: #{tpu_custom_call.1} parent=1 // pred_region
      %85 = dma.done [#allocation6], 256
    $region17: #{tpu_custom_call.1} parent=1 // pred_fallthru
      _
    %86 = vsyncpa [#allocation5], 1
    %87 = vsyncpa [#allocation6], 1

</llo_original>
